<compile_context>
chip_gen: v6e
topology: v6e:2x2x1
jax: 0.10.0
libtpu: 0.0.40
codegen_flags: <defaults>
</compile_context>

<pallas_src>
import jax
import jax.numpy as jnp
import numpy as np
from jax.experimental import pallas as pl
from jax.experimental.pallas import tpu as pltpu

# ---- module constants (from Embedding.__init__) -----------------------------
NUM_EMB_2D = 2
EMB_DIM_2D = 3
NUM_EMB_3D = 3
EMB_DIM_3D = 5
CAT_COLS_2D = [0, 2, 4, 7, 9, 11]       # 2-category columns, original coordinates
CAT_COLS_3D_TORCH = [12]                # literal used by torch (position AFTER 2d expansion)
CAT_COLS_3D_RAW = [6]                   # same column in ORIGINAL coordinates (12 - 3*2)

D_IN = 14                               # raw feature width
D_OUT = (D_IN
         + len(CAT_COLS_2D) * (EMB_DIM_2D - 1)
         + len(CAT_COLS_3D_RAW) * (EMB_DIM_3D - 1))      # = 30

MAX_CATS = max(NUM_EMB_2D, NUM_EMB_3D)                   # = 3
N_FEATS = D_IN * (1 + MAX_CATS)                          # = 56  ([x, x==0, x==1, x==2])


def _column_plan(d_in):
    """Static plan: for each original column -> (kind, emb_index, out_start, width)."""
    plan, out = [], 0
    for j in range(d_in):
        if j in CAT_COLS_2D:
            plan.append(("2d", CAT_COLS_2D.index(j), out, EMB_DIM_2D))
            out += EMB_DIM_2D
        elif j in CAT_COLS_3D_RAW:
            plan.append(("3d", CAT_COLS_3D_RAW.index(j), out, EMB_DIM_3D))
            out += EMB_DIM_3D
        else:
            plan.append(("cont", None, out, 1))
            out += 1
    assert out == D_OUT
    return plan


PLAN = _column_plan(D_IN)


def build_transform(w2, w3):
    """Static (56, 30) matrix folding copy-through + both embedding tables."""
    w2 = np.asarray(w2, np.float32)
    w3 = np.asarray(w3, np.float32)
    T = np.zeros((N_FEATS, D_OUT), np.float32)
    for j, (kind, i, start, width) in enumerate(PLAN):
        if kind == "cont":
            T[j, start] = 1.0                              # identity pass-through
        elif kind == "2d":
            for k in range(NUM_EMB_2D):
                T[D_IN + k * D_IN + j, start:start + EMB_DIM_2D] = \
                    w2[k, i * EMB_DIM_2D:(i + 1) * EMB_DIM_2D]
        else:  # "3d"
            for k in range(NUM_EMB_3D):
                T[D_IN + k * D_IN + j, start:start + EMB_DIM_3D] = \
                    w3[k, i * EMB_DIM_3D:(i + 1) * EMB_DIM_3D]
    return jnp.asarray(T)


# ---- Pallas kernel -----------------------------------------------------------
def embedding_kernel(x_ref, t_ref, o_ref):
    x = x_ref[...]                                          # (TB, D_IN)  f32
    xr = jnp.round(x)                                       # robust int-valued ids
    feats = jnp.concatenate(
        [x] + [(xr == float(k)).astype(jnp.float32) for k in range(MAX_CATS)],
        axis=1)                                             # (TB, 56)
    # Single MXU op + single lane-dense store.
    o_ref[...] = jnp.dot(feats, t_ref[...], preferred_element_type=jnp.float32)


def _round_up(n, m):
    return ((n + m - 1) // m) * m


def embedding_forward(x, w2, w3, *, block_rows=512):
    B, D = x.shape
    assert D == D_IN
    T = build_transform(w2, w3)                             # (56, 30)

    TB = min(block_rows, _round_up(B, 8))                   # multiple of 8
    Bp = _round_up(B, TB)
    if Bp != B:
        x = jnp.pad(x, ((0, Bp - B), (0, 0)))

    out = pl.pallas_call(
        embedding_kernel,
        out_shape=jax.ShapeDtypeStruct((Bp, D_OUT), jnp.float32),
        grid_spec=pltpu.PrefetchScalarGridSpec(
            num_scalar_prefetch=0,
            grid=(Bp // TB,),
            in_specs=[
                pl.BlockSpec((TB, D_IN), lambda i: (i, 0)),
                pl.BlockSpec((N_FEATS, D_OUT), lambda i: (0, 0)),   # resident in VMEM
            ],
            out_specs=pl.BlockSpec((TB, D_OUT), lambda i: (i, 0)),
        ),
        compiler_params=pltpu.CompilerParams(dimension_semantics=("parallel",)),
    )(x, T)
    return out[:B]


# ---- faithful numpy reference (mirrors the torch embed() loop exactly) -------
def reference_forward(x, w2, w3):
    x = np.asarray(x); w2 = np.asarray(w2); w3 = np.asarray(w3)

    def embed(sample, cat_cols, num_emb, dim, weight):
        offset, s = 0, sample
        for index, cat in enumerate(cat_cols):
            category = int(s[cat + offset])
            one_hot = np.zeros((1, num_emb), np.float32)
            one_hot[0, category] = 1.0
            emb = (one_hot @ weight[:, index * dim:index * dim + dim]).reshape(-1)
            s = np.concatenate([s[:cat + offset], emb, s[cat + offset + 1:]], 0)
            offset += dim - 1
        return s

    rows = []
    for b in range(x.shape[0]):
        s = embed(x[b].astype(np.float32), CAT_COLS_2D, NUM_EMB_2D, EMB_DIM_2D, w2)
        s = embed(s, CAT_COLS_3D_TORCH, NUM_EMB_3D, EMB_DIM_3D, w3)
        rows.append(s)
    return np.stack(rows).astype(np.float32)


if __name__ == "__main__":
    key = jax.random.PRNGKey(0)
    k_w2, k_w3, k_cont, k_c2, k_c3 = jax.random.split(key, 5)

    B = 16
    # Parameters: torch.nn.Embedding default init is N(0, 1).
    w2 = jax.random.normal(k_w2, (NUM_EMB_2D, len(CAT_COLS_2D) * EMB_DIM_2D), jnp.float32)
    w3 = jax.random.normal(k_w3, (NUM_EMB_3D, len(CAT_COLS_3D_RAW) * EMB_DIM_3D), jnp.float32)

    # Inputs: continuous columns ~ N(0,1); categorical columns hold valid ids (as floats).
    x = np.array(jax.random.normal(k_cont, (B, D_IN), jnp.float32))
    cats2 = np.array(jax.random.randint(k_c2, (B, len(CAT_COLS_2D)), 0, NUM_EMB_2D))
    cats3 = np.array(jax.random.randint(k_c3, (B, len(CAT_COLS_3D_RAW)), 0, NUM_EMB_3D))
    for ci, c in enumerate(CAT_COLS_2D):
        x[:, c] = cats2[:, ci].astype(np.float32)
    for ci, c in enumerate(CAT_COLS_3D_RAW):
        x[:, c] = cats3[:, ci].astype(np.float32)
    x = jnp.asarray(x, jnp.float32)

    out = embedding_forward(x, w2, w3)
    out = jax.block_until_ready(out)

    ref = reference_forward(x, w2, w3)
    assert out.shape == (B, D_OUT), out.shape
    np.testing.assert_allclose(np.asarray(out), ref, rtol=1e-5, atol=1e-5)

    print("KERNEL_OK")
</pallas_src>

<mosaic_0001>
module attributes {stable_mosaic.version = 11 : i64} {
  func.func @embedding_kernel(%arg0: i32, %arg1: memref<16x14xf32, #tpu.memory_space<vmem>>, %arg2: memref<56x30xf32, #tpu.memory_space<vmem>>, %arg3: memref<16x30xf32, #tpu.memory_space<vmem>>) attributes {dimension_semantics = [#tpu.dimension_semantics<parallel>], iteration_bounds = array<i64: 1>, scalar_prefetch = 0 : i64, scratch_operands = 0 : i64, tpu.core_type = #tpu.core_type<tc>, window_params = [{transform_indices = @transform_0, window_bounds = array<i64: 16, 14>}, {pipeline_mode = #tpu.pipeline_mode<synchronous>, transform_indices = @transform_1, window_bounds = array<i64: 56, 30>}, {transform_indices = @transform_2, window_bounds = array<i64: 16, 30>}]} {
    %c0 = arith.constant 0 : index
    %c0_0 = arith.constant 0 : index
    %0 = vector.load %arg1[%c0, %c0_0] : memref<16x14xf32, #tpu.memory_space<vmem>>, vector<16x14xf32>
    %1 = math.roundeven %0 : vector<16x14xf32>
    %cst = arith.constant 0.000000e+00 : f32
    %2 = vector.broadcast %cst : f32 to vector<16x14xf32>
    %3 = arith.cmpf oeq, %1, %2 : vector<16x14xf32>
    %4 = arith.extui %3 : vector<16x14xi1> to vector<16x14xi32>
    %5 = arith.sitofp %4 : vector<16x14xi32> to vector<16x14xf32>
    %cst_1 = arith.constant 1.000000e+00 : f32
    %6 = vector.broadcast %cst_1 : f32 to vector<16x14xf32>
    %7 = arith.cmpf oeq, %1, %6 : vector<16x14xf32>
    %8 = arith.extui %7 : vector<16x14xi1> to vector<16x14xi32>
    %9 = arith.sitofp %8 : vector<16x14xi32> to vector<16x14xf32>
    %cst_2 = arith.constant 2.000000e+00 : f32
    %10 = vector.broadcast %cst_2 : f32 to vector<16x14xf32>
    %11 = arith.cmpf oeq, %1, %10 : vector<16x14xf32>
    %12 = arith.extui %11 : vector<16x14xi1> to vector<16x14xi32>
    %13 = arith.sitofp %12 : vector<16x14xi32> to vector<16x14xf32>
    %14 = tpu.concatenate %0, %5, %9, %13 in 1 : vector<16x14xf32>, vector<16x14xf32>, vector<16x14xf32>, vector<16x14xf32> -> vector<16x56xf32>
    %c0_3 = arith.constant 0 : index
    %c0_4 = arith.constant 0 : index
    %15 = vector.load %arg2[%c0_3, %c0_4] : memref<56x30xf32, #tpu.memory_space<vmem>>, vector<56x30xf32>
    %cst_5 = arith.constant dense<0.000000e+00> : vector<16x30xf32>
    %16 = tpu.matmul %14, %15, %cst_5 {dimension_numbers = #tpu.dot_dimension_numbers<[1], [0], [0], [1], [0, 0, 1, 1], [], []>} : vector<16x56xf32>, vector<56x30xf32>, vector<16x30xf32> -> vector<16x30xf32>
    %c0_6 = arith.constant 0 : index
    %c0_7 = arith.constant 0 : index
    %17 = vector.load %arg3[%c0_6, %c0_7] : memref<16x30xf32, #tpu.memory_space<vmem>>, vector<16x30xf32>
    tpu.vector_store %arg3[%c0_6, %c0_7], %16 {strides = array<i32>} : memref<16x30xf32, #tpu.memory_space<vmem>>, vector<16x30xf32>,
    return
  }
  func.func @transform_0(%arg0: i32) -> (i32, i32) {
    %c0_i32 = arith.constant 0 : i32
    %c0_i32_0 = arith.constant 0 : i32
    return %arg0, %c0_i32 : i32, i32
  }
  func.func @transform_1(%arg0: i32) -> (i32, i32) {
    %c0_i32 = arith.constant 0 : i32
    %c0_i32_0 = arith.constant 0 : i32
    %c0_i32_1 = arith.constant 0 : i32
    return %c0_i32, %c0_i32_0 : i32, i32
  }
  func.func @transform_2(%arg0: i32) -> (i32, i32) {
    %c0_i32 = arith.constant 0 : i32
    %c0_i32_0 = arith.constant 0 : i32
    return %arg0, %c0_i32 : i32, i32
  }
}

</mosaic_0001>

<llo_original>
// kernel: tpu_custom_call.1
$region0: #{tpu_custom_call.1}
  #allocation0 [shape = 'u32[]', space=smem, size = 0x4, offset = 0x4, fixed_abs, tag = 'smem constant byte address 0x4 - core index']
  #allocation1 [shape = 'u32[144,128]{1,0:T(1,128)}', space=vmem, size = 0x12000, scoped, tag = 'internal scratch']
  %s0 = inlined_call_operand.vmem [shape: f32[16,14], index: 0, kind: input, shape index: {}]
  %s1 = inlined_call_operand.vmem [shape: f32[56,30], index: 1, kind: input, shape index: {}]
  %s2 = inlined_call_operand.hbm [shape: f32[16,30], index: 2, kind: output, shape index: {}]
  %s3 = sld [smem:[#allocation0]]
  $region18: #{tpu_custom_call.1} parent=0
    _
  %s5 = ssub.s32 1, %s3
  %s6 = scalar_select 0, %s5, %s3
  $region1: #{tpu_custom_call.1} parent=0
    #allocation2 [shape = 'u8[8192]{0}', space=vmem, size = 0x2000, scoped, tag = 'output window, operand 0, single buffered']
    #allocation3 [shape = 's32[1]{0}', space=sflag, size = 0x4, scoped, tag = 'scoped memory for tpu_custom_call.1']
    %7 = vsyncpa [#allocation3], 0
    // Predicated region
    $region2: #{tpu_custom_call.1} parent=1 // pred_check
      _
    $region3: #{tpu_custom_call.1} parent=1 // pred_check_branch
      %9 = sbr.rel (0) target = $region5
    $region4: #{tpu_custom_call.1} parent=1 // pred_region
      _
    $region5: #{tpu_custom_call.1} parent=1 // pred_fallthru
      _
    // Predicated region
    $region6: #{tpu_custom_call.1} parent=1 // pred_check
      _
    $region7: #{tpu_custom_call.1} parent=1 // pred_check_branch
      %11 = sbr.rel (0) target = $region9
    $region8: #{tpu_custom_call.1} parent=1 // pred_region
      _
    $region9: #{tpu_custom_call.1} parent=1 // pred_fallthru
      _
    %v12 = vld [vmem:[%s0] sm:$0xff]
    %v13 = vld [vmem:[%s0 + $0x8] sm:$0xff]
    %v14 = vround.ne.pseudo %v12
    %v15 = vround.ne.pseudo %v13
    %vm16 = vcmp.eq.f32.partialorder %v14, 0.0
    %vm17 = vcmp.eq.f32.partialorder %v15, 0.0
    %v18 = vsel %vm16, 1, 0
    %v19 = vsel %vm17, 1, 0
    %v20 = vcvt.s32.f32 %v18
    %v21 = vcvt.s32.f32 %v19
    %vm22 = vcmp.eq.f32.partialorder %v14, 1.0
    %vm23 = vcmp.eq.f32.partialorder %v15, 1.0
    %v24 = vsel %vm22, 1, 0
    %v25 = vsel %vm23, 1, 0
    %v26 = vcvt.s32.f32 %v24
    %v27 = vcvt.s32.f32 %v25
    %vm28 = vcmp.eq.f32.partialorder %v14, 2.0
    %vm29 = vcmp.eq.f32.partialorder %v15, 2.0
    %v30 = vsel %vm28, 1, 0
    %v31 = vsel %vm29, 1, 0
    %v32 = vcvt.s32.f32 %v30
    %v33 = vcvt.s32.f32 %v31
    %36 = vrot.lane.b32.xlu0 %v20, 14
    %v37 = vpop.permute.xlu0 %36
    %38 = vrot.lane.b32.xlu0 %v21, 14
    %v39 = vpop.permute.xlu0 %38
    %44 = vrot.lane.b32.xlu0 %v26, 28
    %v45 = vpop.permute.xlu0 %44
    %46 = vrot.lane.b32.xlu0 %v27, 28
    %v47 = vpop.permute.xlu0 %46
    %52 = vrot.lane.b32.xlu0 %v32, 42
    %v53 = vpop.permute.xlu0 %52
    %54 = vrot.lane.b32.xlu0 %v33, 42
    %v55 = vpop.permute.xlu0 %54
    %vm58 = vcmask 113664
    %v59 = vsel %vm58, %v12, %v37
    %v60 = vsel %vm58, %v13, %v39
    %vm61 = vcmask 228352
    %v62 = vsel %vm61, %v59, %v45
    %v63 = vsel %vm61, %v60, %v47
    %vm64 = vcmask 343040
    %v65 = vsel %vm64, %v62, %v53
    %v66 = vsel %vm64, %v63, %v55
    %v67 = vld [vmem:[%s1] sm:$0xff]
    %v68 = vld [vmem:[%s1 + $0x8] sm:$0xff]
    %v69 = vld [vmem:[%s1 + $0x10] sm:$0xff]
    %v70 = vld [vmem:[%s1 + $0x18] sm:$0xff]
    %v71 = vld [vmem:[%s1 + $0x20] sm:$0xff]
    %v72 = vld [vmem:[%s1 + $0x28] sm:$0xff]
    %v73 = vld [vmem:[%s1 + $0x30] sm:$0xff]
    %vm74 = vcmask 457728
    %v76 = vsel %vm74, %v65, 0
    %v79 = vsel %vm74, %v66, 0
    %81 = vmatprep.subr.mxu0 0.0
    %82 = vmatpush1.msra.mxu0 0.0
    %83 = vmatprep.subr.mxu0 0.0
    %84 = vmatpush1.msra.mxu0 0.0
    %85 = vmatprep.subr.mxu0 0.0
    %86 = vmatpush1.msra.mxu0 0.0
    %87 = vmatprep.subr.mxu0 0.0
    %88 = vmatpush1.msra.mxu0 0.0
    %89 = vmatprep.subr.mxu0 0.0
    %90 = vmatpush1.msra.mxu0 0.0
    %91 = vmatprep.subr.mxu0 0.0
    %92 = vmatpush1.msra.mxu0 0.0
    %93 = vmatprep.subr.mxu0 0.0
    %94 = vmatpush1.msra.mxu0 0.0
    %95 = vmatprep.subr.mxu0 0.0
    %96 = vmatpush1.msra.mxu0 0.0
    %97 = vmatprep.subr.mxu0 0.0
    %98 = vmatpush1.msra.mxu0 0.0
    %99 = vmatprep.subr.mxu0 0.0
    %100 = vmatpush1.msra.mxu0 %v73
    %101 = vmatprep.subr.mxu0 0.0
    %102 = vmatpush1.msra.mxu0 %v72
    %103 = vmatprep.subr.mxu0 0.0
    %104 = vmatpush1.msra.mxu0 %v71
    %105 = vmatprep.subr.mxu0 0.0
    %106 = vmatpush1.msra.mxu0 %v70
    %107 = vmatprep.subr.mxu0 0.0
    %108 = vmatpush1.msra.mxu0 %v69
    %109 = vmatprep.subr.mxu0 0.0
    %110 = vmatpush1.msra.mxu0 %v68
    %111 = vmatprep.subr.mxu0 0.0
    %112 = vmatpush1.msra.mxu0 %v67
    %113 = vmatprep.subr.mxu0 0.0
    %114 = vmatpush2.msra.mxu0 0.0
    %115 = vmatprep.subr.mxu0 0.0
    %116 = vmatpush2.msra.mxu0 0.0
    %117 = vmatprep.subr.mxu0 0.0
    %118 = vmatpush2.msra.mxu0 0.0
    %119 = vmatprep.subr.mxu0 0.0
    %120 = vmatpush2.msra.mxu0 0.0
    %121 = vmatprep.subr.mxu0 0.0
    %122 = vmatpush2.msra.mxu0 0.0
    %123 = vmatprep.subr.mxu0 0.0
    %124 = vmatpush2.msra.mxu0 0.0
    %125 = vmatprep.subr.mxu0 0.0
    %126 = vmatpush2.msra.mxu0 0.0
    %127 = vmatprep.subr.mxu0 0.0
    %128 = vmatpush2.msra.mxu0 0.0
    %129 = vmatprep.subr.mxu0 0.0
    %130 = vmatpush2.msra.mxu0 0.0
    %131 = vmatprep.subr.mxu0 0.0
    %132 = vmatpush2.msra.mxu0 0.0
    %133 = vmatprep.subr.mxu0 0.0
    %134 = vmatpush2.msra.mxu0 0.0
    %135 = vmatprep.subr.mxu0 0.0
    %136 = vmatpush2.msra.mxu0 0.0
    %137 = vmatprep.subr.mxu0 0.0
    %138 = vmatpush2.msra.mxu0 0.0
    %139 = vmatprep.subr.mxu0 0.0
    %140 = vmatpush2.msra.mxu0 0.0
    %141 = vmatprep.subr.mxu0 0.0
    %142 = vmatpush2.msra.mxu0 0.0
    %143 = vmatprep.subr.mxu0 0.0
    %144 = vmatpush2.msra.mxu0 0.0
    %145 = vmatprep.mubr.f32.mxu0 0.0
    %146 = vmatmul.mubr.f32.gmra.mxu0 %v76
    %v147 = vpop.f32.mrf.mxu0
    %v148 = vadd.f32 0.0, %v147
    %v149 = vpop.f32.mrf.mxu0
    %150 = vmatprep.mubr.f32.mxu0 0.0
    %151 = vmatmul.mubr.f32.gmra.mxu0 %v79
    %v152 = vpop.f32.mrf.mxu0
    %v153 = vadd.f32 0.0, %v152
    %v154 = vpop.f32.mrf.mxu0
    %155 = vdwg.mxu0
    %vm156 = vcmask 244736
    %157 = vst.msk [vmem:[#allocation2] sm:$0xff] %vm156, %v148
    %158 = vst.msk [vmem:[#allocation2 + $0x8] sm:$0xff] %vm156, %v153
    // Predicated region
    $region10: #{tpu_custom_call.1} parent=1 // pred_check
      _
    $region11: #{tpu_custom_call.1} parent=1 // pred_check_branch
      %160 = sbr.rel (0) target = $region13
    $region12: #{tpu_custom_call.1} parent=1 // pred_region
      %s162 = ssub.s32 256, 256
      %163 = vsyncadd [#allocation3], %s162
      %s164 = sshll.u32 [#allocation2], 4
      %s165 = int_to_ptr.vmem [resolvable:$true] %s164
      %170 = dma.vmem_to_hbm [thread:$0]  %s165, 256, %s2, [#allocation3], 128, 128, 8
    $region13: #{tpu_custom_call.1} parent=1 // pred_fallthru
      _
    // Predicated region
    $region14: #{tpu_custom_call.1} parent=1 // pred_check
      _
    $region15: #{tpu_custom_call.1} parent=1 // pred_check_branch
      %172 = sbr.rel (0) target = $region17
    $region16: #{tpu_custom_call.1} parent=1 // pred_region
      %173 = dma.done [#allocation3], 256
    $region17: #{tpu_custom_call.1} parent=1 // pred_fallthru
      _
    %174 = vsyncpa [#allocation3], 1

</llo_original>
